<compile_context>
chip_gen: v6e
topology: v6e:2x2x1
jax: 0.10.0
libtpu: 0.0.40
codegen_flags: <defaults>
</compile_context>

<pallas_src>
import functools

import numpy as np
import jax
import jax.numpy as jnp
from jax.experimental import pallas as pl
from jax.experimental.pallas import tpu as pltpu


def _resblock_kernel(x_ref, w1_ref, b1_ref, w2_ref, b2_ref, mask_ref, out_ref,
                     patches_ref, *, W, negative_slope, compute_dtype):
    # x_ref      : (Nb, C, HW) f32   lane-dense images (flattened NCHW)
    # w*_ref     : (C, 9*C)    f32   column t*C+ci == torch w[co, ci, kh, kw], t=kh*3+kw
    # b*_ref     : (C, 1)      f32
    # mask_ref   : (9*C, HW)   f32   0/1 tap validity ("same" zero padding)
    # out_ref    : (Nb, C, HW) f32
    # patches_ref: (9*C, HW)   f32   VMEM scratch holding the 9-tap patch slab
    Nb, C, HW = x_ref.shape

    # Static flattened-domain offsets of the 9 taps (row-major over (di, dj)),
    # matching both the mask rows and the weight-slab column order.
    offs = [di * W + dj for di in (-1, 0, 1) for dj in (-1, 0, 1)]

    w1 = w1_ref[...].astype(compute_dtype)          # (C, 9C)
    w2 = w2_ref[...].astype(compute_dtype)
    b1 = b1_ref[...]                                # (C, 1) f32
    b2 = b2_ref[...]
    mask = mask_ref[...]                            # (9C, HW) f32

    def conv3x3(inp, wslab, bias):
        # inp: (C, HW) f32 -> (C, HW) f32.
        # Build the patch slab: row t*C+ci = inp[ci] shifted by tap t (lane rotate).
        for t, off in enumerate(offs):
            shifted = inp if off == 0 else pltpu.roll(inp, shift=(-off) % HW, axis=1)
            patches_ref[t * C:(t + 1) * C, :] = shifted
        patches = (patches_ref[...] * mask).astype(compute_dtype)   # zero-pad taps
        # One folded matmul per conv: (C, 9C) @ (9C, HW), f32 accumulation.
        return jnp.dot(wslab, patches, preferred_element_type=jnp.float32) + bias

    for n in range(Nb):                              # Nb is small & static: unrolled
        x = x_ref[n]                                 # (C, HW) f32
        h = conv3x3(x, w1, b1)
        h = jnp.maximum(h, negative_slope * h)       # LeakyReLU (slope 0.01)
        y = conv3x3(h, w2, b2)
        out_ref[n] = (x + y).astype(out_ref.dtype)   # residual add, lane-dense store


def _pick_block_n(N):
    """Images per grid step: keep >=2 grid steps (v7x megacore) when possible,
    batching more images per step for larger N to amortize per-step overhead."""
    if N <= 2:
        return 1
    for nb in (4, 2):
        if N % nb == 0 and N // nb >= 2:
            return nb
    return 1


def resblock_pallas(x_nchw, w1, b1, w2, b2, *, negative_slope=0.01,
                    compute_dtype=jnp.float32, block_n=None):
    """ResBlock forward. x_nchw: (N,C,H,W); w*: (C,C,3,3) OIHW; b*: (C,)."""
    N, C, H, W = x_nchw.shape
    HW = H * W
    if block_n is None:
        block_n = _pick_block_n(N)
    assert N % block_n == 0, (N, block_n)
    grid_n = N // block_n

    # Lane-dense activations: NCHW -> (N, C, H*W). Free reshape, no transpose.
    x_flat = x_nchw.reshape(N, C, HW).astype(jnp.float32)

    # Weights OIHW (C,C,3,3) -> (C_out, 9*C_in) slab; column (kh*3+kw)*C + ci matches
    # the patch-row ordering built inside the kernel.
    def to_slab(w):
        return jnp.transpose(w, (0, 2, 3, 1)).reshape(C, 9 * C).astype(jnp.float32)

    w1_s, w2_s = to_slab(w1), to_slab(w2)
    b1_c = b1.reshape(C, 1).astype(jnp.float32)
    b2_c = b2.reshape(C, 1).astype(jnp.float32)

    # 0/1 tap-validity masks over the flattened H*W axis (implements the zero
    # padding), one row per (tap, in-channel). Built with numpy at trace time.
    rows = np.arange(HW) // W
    cols = np.arange(HW) % W
    tap_masks = []
    for di in (-1, 0, 1):
        for dj in (-1, 0, 1):
            ok = ((rows + di >= 0) & (rows + di < H) &
                  (cols + dj >= 0) & (cols + dj < W))
            tap_masks.append(ok.astype(np.float32))
    mask = jnp.asarray(np.repeat(np.stack(tap_masks, axis=0), C, axis=0))  # (9C, HW)

    kernel = functools.partial(_resblock_kernel, W=W,
                               negative_slope=negative_slope,
                               compute_dtype=compute_dtype)

    out_flat = pl.pallas_call(
        kernel,
        out_shape=jax.ShapeDtypeStruct((N, C, HW), jnp.float32),
        grid_spec=pltpu.PrefetchScalarGridSpec(
            num_scalar_prefetch=0,
            grid=(grid_n,),                                   # pipeline over batch
            in_specs=[
                pl.BlockSpec((block_n, C, HW), lambda n: (n, 0, 0)),   # x
                pl.BlockSpec((C, 9 * C), lambda n: (0, 0)),            # w1 slab
                pl.BlockSpec((C, 1), lambda n: (0, 0)),                # b1
                pl.BlockSpec((C, 9 * C), lambda n: (0, 0)),            # w2 slab
                pl.BlockSpec((C, 1), lambda n: (0, 0)),                # b2
                pl.BlockSpec((9 * C, HW), lambda n: (0, 0)),           # tap masks
            ],
            out_specs=pl.BlockSpec((block_n, C, HW), lambda n: (n, 0, 0)),
            scratch_shapes=[
                pltpu.VMEM((9 * C, HW), jnp.float32),          # patch slab scratch
            ],
        ),
        compiler_params=pltpu.CompilerParams(
            dimension_semantics=("parallel",),                 # v7x: 2 TCs split grid
            vmem_limit_bytes=32 * 1024 * 1024,
        ),
    )(x_flat, w1_s, b1_c, w2_s, b2_c, mask)

    # Free reshape back to NCHW.
    return out_flat.reshape(N, C, H, W)


def _reference(x_nchw, w1, b1, w2, b2):
    """Pure-JAX reference (lax conv, NCHW) for correctness check."""
    dn = jax.lax.conv_dimension_numbers(x_nchw.shape, w1.shape,
                                        ("NCHW", "OIHW", "NCHW"))
    h = jax.lax.conv_general_dilated(x_nchw, w1, (1, 1), ((1, 1), (1, 1)),
                                     dimension_numbers=dn)
    h = h + b1.reshape(1, -1, 1, 1)
    h = jnp.where(h > 0, h, 0.01 * h)
    h = jax.lax.conv_general_dilated(h, w2, (1, 1), ((1, 1), (1, 1)),
                                     dimension_numbers=dn)
    h = h + b2.reshape(1, -1, 1, 1)
    return x_nchw + h


if __name__ == "__main__":
    # Small shapes consistent with the module: batch=2, channels=4, spatial=16.
    N, C, H, W = 2, 4, 16, 16

    key = jax.random.PRNGKey(0)
    kx, kw1, kb1, kw2, kb2 = jax.random.split(key, 5)

    x = jax.random.normal(kx, (N, C, H, W), dtype=jnp.float32)
    scale = (2.0 ** 0.5) / ((C * 9) ** 0.5)   # mimics layer_init scaling
    w1 = jax.random.normal(kw1, (C, C, 3, 3), dtype=jnp.float32) * scale
    b1 = jax.random.normal(kb1, (C,), dtype=jnp.float32) * 0.1
    w2 = jax.random.normal(kw2, (C, C, 3, 3), dtype=jnp.float32) * scale
    b2 = jax.random.normal(kb2, (C,), dtype=jnp.float32) * 0.1

    out = jax.block_until_ready(resblock_pallas(x, w1, b1, w2, b2))
    ref = jax.block_until_ready(_reference(x, w1, b1, w2, b2))

    assert out.shape == (N, C, H, W), out.shape
    assert jnp.allclose(out, ref, atol=1e-3, rtol=1e-3), \
        float(jnp.max(jnp.abs(out - ref)))

    print("KERNEL_OK")
</pallas_src>

<mosaic_0001>
module attributes {stable_mosaic.version = 11 : i64} {
  func.func @_resblock_kernel(%arg0: i32, %arg1: memref<1x4x256xf32, #tpu.memory_space<vmem>>, %arg2: memref<4x36xf32, #tpu.memory_space<vmem>>, %arg3: memref<4x1xf32, #tpu.memory_space<vmem>>, %arg4: memref<4x36xf32, #tpu.memory_space<vmem>>, %arg5: memref<4x1xf32, #tpu.memory_space<vmem>>, %arg6: memref<36x256xf32, #tpu.memory_space<vmem>>, %arg7: memref<1x4x256xf32, #tpu.memory_space<vmem>>, %arg8: memref<36x256xf32, #tpu.memory_space<vmem>>) attributes {dimension_semantics = [#tpu.dimension_semantics<parallel>], iteration_bounds = array<i64: 2>, scalar_prefetch = 0 : i64, scratch_operands = 1 : i64, tpu.core_type = #tpu.core_type<tc>, window_params = [{transform_indices = @transform_0, window_bounds = array<i64: 1, 4, 256>}, {pipeline_mode = #tpu.pipeline_mode<synchronous>, transform_indices = @transform_1, window_bounds = array<i64: 4, 36>}, {pipeline_mode = #tpu.pipeline_mode<synchronous>, transform_indices = @transform_2, window_bounds = array<i64: 4, 1>}, {pipeline_mode = #tpu.pipeline_mode<synchronous>, transform_indices = @transform_3, window_bounds = array<i64: 4, 36>}, {pipeline_mode = #tpu.pipeline_mode<synchronous>, transform_indices = @transform_4, window_bounds = array<i64: 4, 1>}, {pipeline_mode = #tpu.pipeline_mode<synchronous>, transform_indices = @transform_5, window_bounds = array<i64: 36, 256>}, {transform_indices = @transform_6, window_bounds = array<i64: 1, 4, 256>}]} {
    %c0 = arith.constant 0 : index
    %c0_0 = arith.constant 0 : index
    %0 = vector.load %arg2[%c0, %c0_0] : memref<4x36xf32, #tpu.memory_space<vmem>>, vector<4x36xf32>
    %c0_1 = arith.constant 0 : index
    %c0_2 = arith.constant 0 : index
    %1 = vector.load %arg4[%c0_1, %c0_2] : memref<4x36xf32, #tpu.memory_space<vmem>>, vector<4x36xf32>
    %c0_3 = arith.constant 0 : index
    %c0_4 = arith.constant 0 : index
    %2 = vector.load %arg3[%c0_3, %c0_4] : memref<4x1xf32, #tpu.memory_space<vmem>>, vector<4x1xf32>
    %c0_5 = arith.constant 0 : index
    %c0_6 = arith.constant 0 : index
    %3 = vector.load %arg5[%c0_5, %c0_6] : memref<4x1xf32, #tpu.memory_space<vmem>>, vector<4x1xf32>
    %c0_7 = arith.constant 0 : index
    %c0_8 = arith.constant 0 : index
    %4 = vector.load %arg6[%c0_7, %c0_8] : memref<36x256xf32, #tpu.memory_space<vmem>>, vector<36x256xf32>
    %c0_9 = arith.constant 0 : index
    %c0_10 = arith.constant 0 : index
    %c0_11 = arith.constant 0 : index
    %5 = vector.load %arg1[%c0_9, %c0_10, %c0_11] : memref<1x4x256xf32, #tpu.memory_space<vmem>>, vector<1x4x256xf32>
    %6 = vector.shape_cast %5 : vector<1x4x256xf32> to vector<4x256xf32>
    %c17_i32 = arith.constant 17 : i32
    %7 = tpu.dynamic_rotate %6 by %c17_i32 dim 1 : vector<4x256xf32>, i32 -> vector<4x256xf32>
    %c0_12 = arith.constant 0 : index
    %c0_13 = arith.constant 0 : index
    %8 = vector.load %arg8[%c0_12, %c0_13] : memref<36x256xf32, #tpu.memory_space<vmem>>, vector<4x256xf32>
    tpu.vector_store %arg8[%c0_12, %c0_13], %7 {strides = array<i32>} : memref<36x256xf32, #tpu.memory_space<vmem>>, vector<4x256xf32>,
    %c16_i32 = arith.constant 16 : i32
    %9 = tpu.dynamic_rotate %6 by %c16_i32 dim 1 : vector<4x256xf32>, i32 -> vector<4x256xf32>
    %c4 = arith.constant 4 : index
    %c0_14 = arith.constant 0 : index
    %10 = vector.load %arg8[%c4, %c0_14] : memref<36x256xf32, #tpu.memory_space<vmem>>, vector<4x256xf32>
    tpu.vector_store %arg8[%c4, %c0_14], %9 {strides = array<i32>} : memref<36x256xf32, #tpu.memory_space<vmem>>, vector<4x256xf32>,
    %c15_i32 = arith.constant 15 : i32
    %11 = tpu.dynamic_rotate %6 by %c15_i32 dim 1 : vector<4x256xf32>, i32 -> vector<4x256xf32>
    %c8 = arith.constant 8 : index
    %c0_15 = arith.constant 0 : index
    %12 = vector.load %arg8[%c8, %c0_15] : memref<36x256xf32, #tpu.memory_space<vmem>>, vector<4x256xf32>
    tpu.vector_store %arg8[%c8, %c0_15], %11 {strides = array<i32>} : memref<36x256xf32, #tpu.memory_space<vmem>>, vector<4x256xf32>,
    %c1_i32 = arith.constant 1 : i32
    %13 = tpu.dynamic_rotate %6 by %c1_i32 dim 1 : vector<4x256xf32>, i32 -> vector<4x256xf32>
    %c12 = arith.constant 12 : index
    %c0_16 = arith.constant 0 : index
    %14 = vector.load %arg8[%c12, %c0_16] : memref<36x256xf32, #tpu.memory_space<vmem>>, vector<4x256xf32>
    tpu.vector_store %arg8[%c12, %c0_16], %13 {strides = array<i32>} : memref<36x256xf32, #tpu.memory_space<vmem>>, vector<4x256xf32>,
    %c16 = arith.constant 16 : index
    %c0_17 = arith.constant 0 : index
    %15 = vector.load %arg8[%c16, %c0_17] : memref<36x256xf32, #tpu.memory_space<vmem>>, vector<4x256xf32>
    tpu.vector_store %arg8[%c16, %c0_17], %6 {strides = array<i32>} : memref<36x256xf32, #tpu.memory_space<vmem>>, vector<4x256xf32>,
    %c255_i32 = arith.constant 255 : i32
    %16 = tpu.dynamic_rotate %6 by %c255_i32 dim 1 : vector<4x256xf32>, i32 -> vector<4x256xf32>
    %c20 = arith.constant 20 : index
    %c0_18 = arith.constant 0 : index
    %17 = vector.load %arg8[%c20, %c0_18] : memref<36x256xf32, #tpu.memory_space<vmem>>, vector<4x256xf32>
    tpu.vector_store %arg8[%c20, %c0_18], %16 {strides = array<i32>} : memref<36x256xf32, #tpu.memory_space<vmem>>, vector<4x256xf32>,
    %c241_i32 = arith.constant 241 : i32
    %18 = tpu.dynamic_rotate %6 by %c241_i32 dim 1 : vector<4x256xf32>, i32 -> vector<4x256xf32>
    %c24 = arith.constant 24 : index
    %c0_19 = arith.constant 0 : index
    %19 = vector.load %arg8[%c24, %c0_19] : memref<36x256xf32, #tpu.memory_space<vmem>>, vector<4x256xf32>
    tpu.vector_store %arg8[%c24, %c0_19], %18 {strides = array<i32>} : memref<36x256xf32, #tpu.memory_space<vmem>>, vector<4x256xf32>,
    %c240_i32 = arith.constant 240 : i32
    %20 = tpu.dynamic_rotate %6 by %c240_i32 dim 1 : vector<4x256xf32>, i32 -> vector<4x256xf32>
    %c28 = arith.constant 28 : index
    %c0_20 = arith.constant 0 : index
    %21 = vector.load %arg8[%c28, %c0_20] : memref<36x256xf32, #tpu.memory_space<vmem>>, vector<4x256xf32>
    tpu.vector_store %arg8[%c28, %c0_20], %20 {strides = array<i32>} : memref<36x256xf32, #tpu.memory_space<vmem>>, vector<4x256xf32>,
    %c239_i32 = arith.constant 239 : i32
    %22 = tpu.dynamic_rotate %6 by %c239_i32 dim 1 : vector<4x256xf32>, i32 -> vector<4x256xf32>
    %c32 = arith.constant 32 : index
    %c0_21 = arith.constant 0 : index
    %23 = vector.load %arg8[%c32, %c0_21] : memref<36x256xf32, #tpu.memory_space<vmem>>, vector<4x256xf32>
    tpu.vector_store %arg8[%c32, %c0_21], %22 {strides = array<i32>} : memref<36x256xf32, #tpu.memory_space<vmem>>, vector<4x256xf32>,
    %c0_22 = arith.constant 0 : index
    %c0_23 = arith.constant 0 : index
    %24 = vector.load %arg8[%c0_22, %c0_23] : memref<36x256xf32, #tpu.memory_space<vmem>>, vector<36x256xf32>
    %25 = arith.mulf %24, %4 : vector<36x256xf32>
    %cst = arith.constant dense<0.000000e+00> : vector<4x256xf32>
    %26 = tpu.matmul %0, %25, %cst {dimension_numbers = #tpu.dot_dimension_numbers<[1], [0], [0], [1], [0, 0, 1, 1], [], []>} : vector<4x36xf32>, vector<36x256xf32>, vector<4x256xf32> -> vector<4x256xf32>
    %27 = vector.broadcast %2 : vector<4x1xf32> to vector<4x256xf32>
    %28 = arith.addf %26, %27 : vector<4x256xf32>
    %cst_24 = arith.constant 0.00999999977 : f32
    %29 = vector.broadcast %cst_24 : f32 to vector<4x256xf32>
    %30 = arith.mulf %29, %28 : vector<4x256xf32>
    %31 = arith.maximumf %28, %30 : vector<4x256xf32>
    %c17_i32_25 = arith.constant 17 : i32
    %32 = tpu.dynamic_rotate %31 by %c17_i32_25 dim 1 : vector<4x256xf32>, i32 -> vector<4x256xf32>
    %c0_26 = arith.constant 0 : index
    %c0_27 = arith.constant 0 : index
    %33 = vector.load %arg8[%c0_26, %c0_27] : memref<36x256xf32, #tpu.memory_space<vmem>>, vector<4x256xf32>
    tpu.vector_store %arg8[%c0_26, %c0_27], %32 {strides = array<i32>} : memref<36x256xf32, #tpu.memory_space<vmem>>, vector<4x256xf32>,
    %c16_i32_28 = arith.constant 16 : i32
    %34 = tpu.dynamic_rotate %31 by %c16_i32_28 dim 1 : vector<4x256xf32>, i32 -> vector<4x256xf32>
    %c4_29 = arith.constant 4 : index
    %c0_30 = arith.constant 0 : index
    %35 = vector.load %arg8[%c4_29, %c0_30] : memref<36x256xf32, #tpu.memory_space<vmem>>, vector<4x256xf32>
    tpu.vector_store %arg8[%c4_29, %c0_30], %34 {strides = array<i32>} : memref<36x256xf32, #tpu.memory_space<vmem>>, vector<4x256xf32>,
    %c15_i32_31 = arith.constant 15 : i32
    %36 = tpu.dynamic_rotate %31 by %c15_i32_31 dim 1 : vector<4x256xf32>, i32 -> vector<4x256xf32>
    %c8_32 = arith.constant 8 : index
    %c0_33 = arith.constant 0 : index
    %37 = vector.load %arg8[%c8_32, %c0_33] : memref<36x256xf32, #tpu.memory_space<vmem>>, vector<4x256xf32>
    tpu.vector_store %arg8[%c8_32, %c0_33], %36 {strides = array<i32>} : memref<36x256xf32, #tpu.memory_space<vmem>>, vector<4x256xf32>,
    %c1_i32_34 = arith.constant 1 : i32
    %38 = tpu.dynamic_rotate %31 by %c1_i32_34 dim 1 : vector<4x256xf32>, i32 -> vector<4x256xf32>
    %c12_35 = arith.constant 12 : index
    %c0_36 = arith.constant 0 : index
    %39 = vector.load %arg8[%c12_35, %c0_36] : memref<36x256xf32, #tpu.memory_space<vmem>>, vector<4x256xf32>
    tpu.vector_store %arg8[%c12_35, %c0_36], %38 {strides = array<i32>} : memref<36x256xf32, #tpu.memory_space<vmem>>, vector<4x256xf32>,
    %c16_37 = arith.constant 16 : index
    %c0_38 = arith.constant 0 : index
    %40 = vector.load %arg8[%c16_37, %c0_38] : memref<36x256xf32, #tpu.memory_space<vmem>>, vector<4x256xf32>
    tpu.vector_store %arg8[%c16_37, %c0_38], %31 {strides = array<i32>} : memref<36x256xf32, #tpu.memory_space<vmem>>, vector<4x256xf32>,
    %c255_i32_39 = arith.constant 255 : i32
    %41 = tpu.dynamic_rotate %31 by %c255_i32_39 dim 1 : vector<4x256xf32>, i32 -> vector<4x256xf32>
    %c20_40 = arith.constant 20 : index
    %c0_41 = arith.constant 0 : index
    %42 = vector.load %arg8[%c20_40, %c0_41] : memref<36x256xf32, #tpu.memory_space<vmem>>, vector<4x256xf32>
    tpu.vector_store %arg8[%c20_40, %c0_41], %41 {strides = array<i32>} : memref<36x256xf32, #tpu.memory_space<vmem>>, vector<4x256xf32>,
    %c241_i32_42 = arith.constant 241 : i32
    %43 = tpu.dynamic_rotate %31 by %c241_i32_42 dim 1 : vector<4x256xf32>, i32 -> vector<4x256xf32>
    %c24_43 = arith.constant 24 : index
    %c0_44 = arith.constant 0 : index
    %44 = vector.load %arg8[%c24_43, %c0_44] : memref<36x256xf32, #tpu.memory_space<vmem>>, vector<4x256xf32>
    tpu.vector_store %arg8[%c24_43, %c0_44], %43 {strides = array<i32>} : memref<36x256xf32, #tpu.memory_space<vmem>>, vector<4x256xf32>,
    %c240_i32_45 = arith.constant 240 : i32
    %45 = tpu.dynamic_rotate %31 by %c240_i32_45 dim 1 : vector<4x256xf32>, i32 -> vector<4x256xf32>
    %c28_46 = arith.constant 28 : index
    %c0_47 = arith.constant 0 : index
    %46 = vector.load %arg8[%c28_46, %c0_47] : memref<36x256xf32, #tpu.memory_space<vmem>>, vector<4x256xf32>
    tpu.vector_store %arg8[%c28_46, %c0_47], %45 {strides = array<i32>} : memref<36x256xf32, #tpu.memory_space<vmem>>, vector<4x256xf32>,
    %c239_i32_48 = arith.constant 239 : i32
    %47 = tpu.dynamic_rotate %31 by %c239_i32_48 dim 1 : vector<4x256xf32>, i32 -> vector<4x256xf32>
    %c32_49 = arith.constant 32 : index
    %c0_50 = arith.constant 0 : index
    %48 = vector.load %arg8[%c32_49, %c0_50] : memref<36x256xf32, #tpu.memory_space<vmem>>, vector<4x256xf32>
    tpu.vector_store %arg8[%c32_49, %c0_50], %47 {strides = array<i32>} : memref<36x256xf32, #tpu.memory_space<vmem>>, vector<4x256xf32>,
    %c0_51 = arith.constant 0 : index
    %c0_52 = arith.constant 0 : index
    %49 = vector.load %arg8[%c0_51, %c0_52] : memref<36x256xf32, #tpu.memory_space<vmem>>, vector<36x256xf32>
    %50 = arith.mulf %49, %4 : vector<36x256xf32>
    %cst_53 = arith.constant dense<0.000000e+00> : vector<4x256xf32>
    %51 = tpu.matmul %1, %50, %cst_53 {dimension_numbers = #tpu.dot_dimension_numbers<[1], [0], [0], [1], [0, 0, 1, 1], [], []>} : vector<4x36xf32>, vector<36x256xf32>, vector<4x256xf32> -> vector<4x256xf32>
    %52 = vector.broadcast %3 : vector<4x1xf32> to vector<4x256xf32>
    %53 = arith.addf %51, %52 : vector<4x256xf32>
    %54 = arith.addf %6, %53 : vector<4x256xf32>
    %c0_54 = arith.constant 0 : index
    %c0_55 = arith.constant 0 : index
    %c0_56 = arith.constant 0 : index
    %55 = vector.load %arg7[%c0_54, %c0_55, %c0_56] : memref<1x4x256xf32, #tpu.memory_space<vmem>>, vector<1x4x256xf32>
    %56 = vector.shape_cast %55 : vector<1x4x256xf32> to vector<4x256xf32>
    %57 = vector.shape_cast %54 : vector<4x256xf32> to vector<1x4x256xf32>
    tpu.vector_store %arg7[%c0_54, %c0_55, %c0_56], %57 {strides = array<i32>} : memref<1x4x256xf32, #tpu.memory_space<vmem>>, vector<1x4x256xf32>,
    return
  }
  func.func @transform_0(%arg0: i32) -> (i32, i32, i32) {
    %c0_i32 = arith.constant 0 : i32
    %c0_i32_0 = arith.constant 0 : i32
    %c0_i32_1 = arith.constant 0 : i32
    return %arg0, %c0_i32, %c0_i32_0 : i32, i32, i32
  }
  func.func @transform_1(%arg0: i32) -> (i32, i32) {
    %c0_i32 = arith.constant 0 : i32
    %c0_i32_0 = arith.constant 0 : i32
    %c0_i32_1 = arith.constant 0 : i32
    return %c0_i32, %c0_i32_0 : i32, i32
  }
  func.func @transform_2(%arg0: i32) -> (i32, i32) {
    %c0_i32 = arith.constant 0 : i32
    %c0_i32_0 = arith.constant 0 : i32
    %c0_i32_1 = arith.constant 0 : i32
    return %c0_i32, %c0_i32_0 : i32, i32
  }
  func.func @transform_3(%arg0: i32) -> (i32, i32) {
    %c0_i32 = arith.constant 0 : i32
    %c0_i32_0 = arith.constant 0 : i32
    %c0_i32_1 = arith.constant 0 : i32
    return %c0_i32, %c0_i32_0 : i32, i32
  }
  func.func @transform_4(%arg0: i32) -> (i32, i32) {
    %c0_i32 = arith.constant 0 : i32
    %c0_i32_0 = arith.constant 0 : i32
    %c0_i32_1 = arith.constant 0 : i32
    return %c0_i32, %c0_i32_0 : i32, i32
  }
  func.func @transform_5(%arg0: i32) -> (i32, i32) {
    %c0_i32 = arith.constant 0 : i32
    %c0_i32_0 = arith.constant 0 : i32
    %c0_i32_1 = arith.constant 0 : i32
    return %c0_i32, %c0_i32_0 : i32, i32
  }
  func.func @transform_6(%arg0: i32) -> (i32, i32, i32) {
    %c0_i32 = arith.constant 0 : i32
    %c0_i32_0 = arith.constant 0 : i32
    %c0_i32_1 = arith.constant 0 : i32
    return %arg0, %c0_i32, %c0_i32_0 : i32, i32, i32
  }
}

</mosaic_0001>

<llo_original>
// kernel: tpu_custom_call.1
$region0: #{tpu_custom_call.1}
  #allocation0 [shape = 'u32[]', space=smem, size = 0x4, offset = 0x4, fixed_abs, tag = 'smem constant byte address 0x4 - core index']
  #allocation1 [shape = 'u32[144,128]{1,0:T(1,128)}', space=vmem, size = 0x12000, scoped, tag = 'internal scratch']
  #allocation2 [shape = 'f32[36,256]{1,0:T(8,128)}', space=vmem, size = 0xa000, scoped, tag = 'scratch operand']
  %s0 = inlined_call_operand.hbm [shape: f32[2,4,256], index: 0, kind: input, shape index: {}]
  %s1 = inlined_call_operand.vmem [shape: f32[4,36], index: 1, kind: input, shape index: {}]
  %s2 = inlined_call_operand.vmem [shape: f32[4,1], index: 2, kind: input, shape index: {}]
  %s3 = inlined_call_operand.vmem [shape: f32[4,36], index: 3, kind: input, shape index: {}]
  %s4 = inlined_call_operand.vmem [shape: f32[4,1], index: 4, kind: input, shape index: {}]
  %s5 = inlined_call_operand.hbm [shape: f32[36,256], index: 5, kind: input, shape index: {}]
  %s6 = inlined_call_operand.hbm [shape: f32[2,4,256], index: 6, kind: output, shape index: {}]
  %s7 = sld [smem:[#allocation0]]
  $region65: #{tpu_custom_call.1} parent=0
    _
  %s9 = ssub.s32 1, %s7
  %s10 = scalar_select 0, %s9, %s7
  $region1: #{tpu_custom_call.1} parent=0
    #allocation3 [shape = 'u8[8192]{0}', space=vmem, size = 0x2000, scoped, tag = 'input window, operand 0']
    #allocation4 [shape = 's32[2]{0}', space=sflag, size = 0x8, scoped, tag = 'scoped memory for tpu_custom_call.1']
    #allocation5 [shape = 's32[2]{0}', space=sflag, size = 0x8, scoped, tag = 'scoped memory for tpu_custom_call.1']
    #allocation6 [shape = 'u8[40960]{0}', space=vmem, size = 0xa000, scoped, tag = 'input window, operand 5, single buffered']
    #allocation7 [shape = 's32[1]{0}', space=sflag, size = 0x4, scoped, tag = 'scoped memory for tpu_custom_call.1']
    #allocation8 [shape = 'u8[8192]{0}', space=vmem, size = 0x2000, scoped, tag = 'output window, operand 0']
    %11 = vsyncpa [#allocation4], 0
    %s12 = scalar_lea.sflag [#allocation4], 1
    %13 = vsyncpa %s12, 0
    %14 = vsyncpa [#allocation7], 0
    %15 = vsyncpa [#allocation5], 0
    %s16 = scalar_lea.sflag [#allocation5], 1
    %17 = vsyncpa %s16, 0
    loop: start=0, step=1, limit=4
    $region2: #{tpu_custom_call.1} parent=1 // loop_pre_header
      _
    $region3: #{tpu_custom_call.1} parent=1 // loop_header
      %s19 = sphi 0, %s23
      %p20 = scmp.ge.s32.totalorder %s19, 4
      %s29 = sphi 0, %s31
      %s32 = sphi 0, %s29
      %s33 = sphi 0, %s32
      %s49 = sphi 0, %s33
      %s53 = sphi 0, %s53
      %s55 = sphi 0, %s53
      %s56 = sphi 0, %s55
      %s70 = sphi 0, %s56
      %s74 = sphi 0, %s74
      %s76 = sphi 0, %s74
      %s77 = sphi 0, %s76
      %s91 = sphi 0, %s77
      %s95 = sphi 0, %s95
      %s97 = sphi 0, %s95
      %s98 = sphi 0, %s97
      %s112 = sphi 0, %s98
      %s116 = sphi 0, %s116
      %s118 = sphi 0, %s116
      %s119 = sphi 0, %s118
      %s133 = sphi 0, %s119
      %s137 = sphi 0, %s137
      %s139 = sphi 0, %s137
      %s140 = sphi 0, %s139
      %s154 = sphi 0, %s140
      %s160 = sphi 0, %s162
      %s163 = sphi 0, %s160
      %s164 = sphi 0, %s163
      %s180 = sphi 0, %s164
    $region4: #{tpu_custom_call.1} parent=1 // loop_header_branch
      %22 = sbr.rel (%p20) target = $region8
    $region5: #{tpu_custom_call.1} parent=1 // loop_body
      %s24 = ssub.s32 %s19, 1
      %s25 = ssub.s32 %s19, 2
      %s26 = sadd.s32 %s19, 1
      %s27 = ssub.s32 %s19, %s26
      %p28 = scmp.eq.s32.totalorder %s27, 0
      %s30 = sadd.s32 %s29, 1
      %s31 = scalar_select %p28, %s29, %s30
      %p34 = pneg %p28
      %p35 = scmp.eq.s32.totalorder %s19, 1
      %p36 = por %p34, %p35
      %p37 = scmp.ne.s32.totalorder %s29, %s32
      %p38 = scmp.eq.s32.totalorder %s19, 0
      %p39 = por %p37, %p38
      %p40 = scmp.ne.s32.totalorder %s29, %s32
      %p41 = scmp.eq.s32.totalorder %s24, 1
      %p42 = por %p40, %p41
      %p43 = scmp.ne.s32.totalorder %s32, %s33
      %p44 = scmp.eq.s32.totalorder %s24, 0
      %p45 = por %p43, %p44
      %p46 = scmp.ne.s32.totalorder %s32, %s33
      %p47 = scmp.eq.s32.totalorder %s25, 1
      %p48 = por %p46, %p47
      %p50 = scmp.ne.s32.totalorder %s33, %s49
      %p51 = scmp.eq.s32.totalorder %s25, 0
      %p52 = por %p50, %p51
      %s54 = sadd.s32 %s53, 1
      %p57 = scmp.eq.s32.totalorder %s19, 1
      %p58 = scmp.ne.s32.totalorder %s53, %s55
      %p59 = scmp.eq.s32.totalorder %s19, 0
      %p60 = por %p58, %p59
      %p61 = scmp.ne.s32.totalorder %s53, %s55
      %p62 = scmp.eq.s32.totalorder %s24, 1
      %p63 = por %p61, %p62
      %p64 = scmp.ne.s32.totalorder %s55, %s56
      %p65 = scmp.eq.s32.totalorder %s24, 0
      %p66 = por %p64, %p65
      %p67 = scmp.ne.s32.totalorder %s55, %s56
      %p68 = scmp.eq.s32.totalorder %s25, 1
      %p69 = por %p67, %p68
      %p71 = scmp.ne.s32.totalorder %s56, %s70
      %p72 = scmp.eq.s32.totalorder %s25, 0
      %p73 = por %p71, %p72
      %s75 = sadd.s32 %s74, 1
      %p78 = scmp.eq.s32.totalorder %s19, 1
      %p79 = scmp.ne.s32.totalorder %s74, %s76
      %p80 = scmp.eq.s32.totalorder %s19, 0
      %p81 = por %p79, %p80
      %p82 = scmp.ne.s32.totalorder %s74, %s76
      %p83 = scmp.eq.s32.totalorder %s24, 1
      %p84 = por %p82, %p83
      %p85 = scmp.ne.s32.totalorder %s76, %s77
      %p86 = scmp.eq.s32.totalorder %s24, 0
      %p87 = por %p85, %p86
      %p88 = scmp.ne.s32.totalorder %s76, %s77
      %p89 = scmp.eq.s32.totalorder %s25, 1
      %p90 = por %p88, %p89
      %p92 = scmp.ne.s32.totalorder %s77, %s91
      %p93 = scmp.eq.s32.totalorder %s25, 0
      %p94 = por %p92, %p93
      %s96 = sadd.s32 %s95, 1
      %p99 = scmp.eq.s32.totalorder %s19, 1
      %p100 = scmp.ne.s32.totalorder %s95, %s97
      %p101 = scmp.eq.s32.totalorder %s19, 0
      %p102 = por %p100, %p101
      %p103 = scmp.ne.s32.totalorder %s95, %s97
      %p104 = scmp.eq.s32.totalorder %s24, 1
      %p105 = por %p103, %p104
      %p106 = scmp.ne.s32.totalorder %s97, %s98
      %p107 = scmp.eq.s32.totalorder %s24, 0
      %p108 = por %p106, %p107
      %p109 = scmp.ne.s32.totalorder %s97, %s98
      %p110 = scmp.eq.s32.totalorder %s25, 1
      %p111 = por %p109, %p110
      %p113 = scmp.ne.s32.totalorder %s98, %s112
      %p114 = scmp.eq.s32.totalorder %s25, 0
      %p115 = por %p113, %p114
      %s117 = sadd.s32 %s116, 1
      %p120 = scmp.eq.s32.totalorder %s19, 1
      %p121 = scmp.ne.s32.totalorder %s116, %s118
      %p122 = scmp.eq.s32.totalorder %s19, 0
      %p123 = por %p121, %p122
      %p124 = scmp.ne.s32.totalorder %s116, %s118
      %p125 = scmp.eq.s32.totalorder %s24, 1
      %p126 = por %p124, %p125
      %p127 = scmp.ne.s32.totalorder %s118, %s119
      %p128 = scmp.eq.s32.totalorder %s24, 0
      %p129 = por %p127, %p128
      %p130 = scmp.ne.s32.totalorder %s118, %s119
      %p131 = scmp.eq.s32.totalorder %s25, 1
      %p132 = por %p130, %p131
      %p134 = scmp.ne.s32.totalorder %s119, %s133
      %p135 = scmp.eq.s32.totalorder %s25, 0
      %p136 = por %p134, %p135
      %s138 = sadd.s32 %s137, 1
      %p141 = scmp.eq.s32.totalorder %s19, 1
      %p142 = scmp.ne.s32.totalorder %s137, %s139
      %p143 = scmp.eq.s32.totalorder %s19, 0
      %p144 = por %p142, %p143
      %p145 = scmp.ne.s32.totalorder %s137, %s139
      %p146 = scmp.eq.s32.totalorder %s24, 1
      %p147 = por %p145, %p146
      %p148 = scmp.ne.s32.totalorder %s139, %s140
      %p149 = scmp.eq.s32.totalorder %s24, 0
      %p150 = por %p148, %p149
      %p151 = scmp.ne.s32.totalorder %s139, %s140
      %p152 = scmp.eq.s32.totalorder %s25, 1
      %p153 = por %p151, %p152
      %p155 = scmp.ne.s32.totalorder %s140, %s154
      %p156 = scmp.eq.s32.totalorder %s25, 0
      %p157 = por %p155, %p156
      %s158 = ssub.s32 %s19, %s26
      %p159 = scmp.eq.s32.totalorder %s158, 0
      %s161 = sadd.s32 %s160, 1
      %s162 = scalar_select %p159, %s160, %s161
      %p165 = pneg %p159
      %p166 = scmp.eq.s32.totalorder %s19, 1
      %p167 = por %p165, %p166
      %p168 = scmp.ne.s32.totalorder %s160, %s163
      %p169 = scmp.eq.s32.totalorder %s19, 0
      %p170 = por %p168, %p169
      %p171 = scmp.ne.s32.totalorder %s160, %s163
      %p172 = scmp.eq.s32.totalorder %s24, 1
      %p173 = por %p171, %p172
      %p174 = scmp.ne.s32.totalorder %s163, %s164
      %p175 = scmp.eq.s32.totalorder %s24, 0
      %p176 = por %p174, %p175
      %p177 = scmp.ne.s32.totalorder %s163, %s164
      %p178 = scmp.eq.s32.totalorder %s25, 1
      %p179 = por %p177, %p178
      %p181 = scmp.ne.s32.totalorder %s164, %s180
      %p182 = scmp.eq.s32.totalorder %s25, 0
      %p183 = por %p181, %p182
      %p184 = scmp.le.s32.totalorder 1, %s19
      %p185 = scmp.lt.s32.totalorder %s19, 3
      %p186 = pnand %p184, %p185
      %p187 = pneg %p186
      // Predicated region
      $region9: #{tpu_custom_call.1} parent=5 // pred_check
        _
      $region10: #{tpu_custom_call.1} parent=5 // pred_check_branch
        %189 = sbr.rel (%p186) target = $region12
      $region11: #{tpu_custom_call.1} parent=5 // pred_region
        %s190 = ssub.s32 %s19, 1
        // Predicated region
        $region13: #{tpu_custom_call.1} parent=11 // pred_check
          %p191 = pneg %p66
        $region14: #{tpu_custom_call.1} parent=11 // pred_check_branch
          %193 = sbr.rel (%p191) target = $region16
        $region15: #{tpu_custom_call.1} parent=11 // pred_region
          _
        $region16: #{tpu_custom_call.1} parent=11 // pred_fallthru
          _
        // Predicated region
        $region17: #{tpu_custom_call.1} parent=11 // pred_check
          %p194 = pneg %p87
        $region18: #{tpu_custom_call.1} parent=11 // pred_check_branch
          %196 = sbr.rel (%p194) target = $region20
        $region19: #{tpu_custom_call.1} parent=11 // pred_region
          _
        $region20: #{tpu_custom_call.1} parent=11 // pred_fallthru
          _
        // Predicated region
        $region21: #{tpu_custom_call.1} parent=11 // pred_check
          %p197 = pneg %p108
        $region22: #{tpu_custom_call.1} parent=11 // pred_check_branch
          %199 = sbr.rel (%p197) target = $region24
        $region23: #{tpu_custom_call.1} parent=11 // pred_region
          _
        $region24: #{tpu_custom_call.1} parent=11 // pred_fallthru
          _
        // Predicated region
        $region25: #{tpu_custom_call.1} parent=11 // pred_check
          %p200 = pneg %p129
        $region26: #{tpu_custom_call.1} parent=11 // pred_check_branch
          %202 = sbr.rel (%p200) target = $region28
        $region27: #{tpu_custom_call.1} parent=11 // pred_region
          _
        $region28: #{tpu_custom_call.1} parent=11 // pred_fallthru
          _
        // Predicated region
        $region29: #{tpu_custom_call.1} parent=11 // pred_check
          %p203 = pneg %p150
        $region30: #{tpu_custom_call.1} parent=11 // pred_check_branch
          %205 = sbr.rel (%p203) target = $region32
        $region31: #{tpu_custom_call.1} parent=11 // pred_region
          %s207 = ssub.s32 1280, 1280
          %208 = vsyncadd [#allocation7], %s207
          %s209 = sshll.u32 [#allocation6], 4
          %s210 = int_to_ptr.vmem [resolvable:$true] %s209
          %215 = dma.hbm_to_vmem [thread:$0]  %s5, 1280, %s210, [#allocation7], 256, 256, 16
        $region32: #{tpu_custom_call.1} parent=11 // pred_fallthru
          _
      $region12: #{tpu_custom_call.1} parent=5 // pred_fallthru
        _
      %p216 = scmp.lt.s32.totalorder %s19, 2
      // Predicated region
      $region33: #{tpu_custom_call.1} parent=5 // pred_check
        %p217 = pneg %p216
      $region34: #{tpu_custom_call.1} parent=5 // pred_check_branch
        %219 = sbr.rel (%p217) target = $region36
      $region35: #{tpu_custom_call.1} parent=5 // pred_region
        // Predicated region
        $region37: #{tpu_custom_call.1} parent=35 // pred_check
          %p220 = pneg %p39
        $region38: #{tpu_custom_call.1} parent=35 // pred_check_branch
          %222 = sbr.rel (%p220) target = $region40
        $region39: #{tpu_custom_call.1} parent=35 // pred_region
          %s223 = sand.u32 %s29, 1
          %s224 = scalar_lea.sflag [#allocation4], %s223
          %s225 = sand.u32 %s29, 1
          %s226 = smul.addr %s225, 8
          %s227 = scalar_lea.vmem [#allocation3], %s226
          %s229 = ssub.s32 128, 128
          %230 = vsyncadd %s224, %s229
          %s231 = smul.addr %s19, 2
          %s232 = smul.addr %s231, 64
          %s233 = scalar_lea.hbm %s0, %s232
          %s235 = sshll.u32 %s227, 4
          %s236 = int_to_ptr.vmem [resolvable:$true] %s235
          %238 = dma.hbm_to_vmem [thread:$0]  %s233, 128, %s236, %s224
        $region40: #{tpu_custom_call.1} parent=35 // pred_fallthru
          _
      $region36: #{tpu_custom_call.1} parent=5 // pred_fallthru
        _
      %p239 = scmp.le.s32.totalorder 1, %s19
      %p240 = scmp.lt.s32.totalorder %s19, 3
      %p241 = pnand %p239, %p240
      %p242 = pneg %p241
      // Predicated region
      $region41: #{tpu_custom_call.1} parent=5 // pred_check
        _
      $region42: #{tpu_custom_call.1} parent=5 // pred_check_branch
        %244 = sbr.rel (%p241) target = $region44
      $region43: #{tpu_custom_call.1} parent=5 // pred_region
        %s245 = ssub.s32 %s19, 1
        %s246 = sand.u32 %s32, 1
        %s247 = scalar_lea.sflag [#allocation4], %s246
        %s248 = sand.u32 %s32, 1
        %s249 = smul.addr %s248, 8
        %s250 = scalar_lea.vmem [#allocation3], %s249
        // Predicated region
        $region45: #{tpu_custom_call.1} parent=43 // pred_check
          %p251 = pneg %p45
        $region46: #{tpu_custom_call.1} parent=43 // pred_check_branch
          %253 = sbr.rel (%p251) target = $region48
        $region47: #{tpu_custom_call.1} parent=43 // pred_region
          %254 = dma.done %s247, 128
        $region48: #{tpu_custom_call.1} parent=43 // pred_fallthru
          _
        // Predicated region
        $region49: #{tpu_custom_call.1} parent=43 // pred_check
          %p255 = pneg %p150
        $region50: #{tpu_custom_call.1} parent=43 // pred_check_branch
          %257 = sbr.rel (%p255) target = $region52
        $region51: #{tpu_custom_call.1} parent=43 // pred_region
          %258 = dma.done [#allocation7], 1280
        $region52: #{tpu_custom_call.1} parent=43 // pred_fallthru
          _
        %s259 = sand.u32 %s32, 1
        %s260 = scalar_lea.sflag [#allocation4], %s259
        %s261 = sand.u32 %s32, 1
        %s262 = smul.addr %s261, 8
        %s263 = scalar_lea.vmem [#allocation3], %s262
        %p264 = pneg %p45
        %p265 = pneg %p42
        %p266 = pneg %p66
        %p267 = pneg %p63
        %p268 = pneg %p87
        %p269 = pneg %p84
        %p270 = pneg %p108
        %p271 = pneg %p105
        %p272 = pneg %p129
        %p273 = pneg %p126
        %p274 = pneg %p150
        %p275 = pneg %p147
        %p276 = pneg %p176
        %p277 = pneg %p173
        %s278 = sand.u32 %s163, 1
        %s279 = scalar_lea.sflag [#allocation5], %s278
        %s280 = sand.u32 %s163, 1
        %s281 = smul.addr %s280, 8
        %s282 = scalar_lea.vmem [#allocation8], %s281
        %v283 = vld [vmem:[%s1] sm:$0xf]
        %v284 = vld [vmem:[%s3] sm:$0xf]
        %v285 = vld [vmem:[%s2] sm:$0xf]
        %v286 = vld [vmem:[%s4] sm:$0xf]
        %v287 = vld [vmem:[#allocation6] sm:$0xff]
        %v288 = vld [vmem:[#allocation6 + $0x8] sm:$0xff]
        %v289 = vld [vmem:[#allocation6 + $0x10] sm:$0xff]
        %v290 = vld [vmem:[#allocation6 + $0x18] sm:$0xff]
        %v291 = vld [vmem:[#allocation6 + $0x20] sm:$0xff]
        %v292 = vld [vmem:[#allocation6 + $0x28] sm:$0xff]
        %v293 = vld [vmem:[#allocation6 + $0x30] sm:$0xff]
        %v294 = vld [vmem:[#allocation6 + $0x38] sm:$0xff]
        %v295 = vld [vmem:[#allocation6 + $0x40] sm:$0xf]
        %v296 = vld [vmem:[#allocation6 + $0x48] sm:$0xf]
        %v297 = vld [vmem:[%s250] sm:$0xff]
        %v299 = vcombine.high %v297, %v297
        %301 = vrot.lane.b32.xlu0 %v297, 17
        %v302 = vpop.permute.xlu0 %301
        %303 = vrot.lane.b32.xlu0 %v299, 17
        %v304 = vpop.permute.xlu0 %303
        %v305 = vlaneseq
        %v306 = vand.u32 %v305, 127
        %vm307 = vcmp.lt.s32.totalorder %v306, 17
        %v308 = vsel %vm307, %v302, %v304
        %v309 = vsel %vm307, %v304, %v302
        %310 = vst [vmem:[#allocation2] sm:$0xf] %v309
        %311 = vst [vmem:[#allocation2 + $0x8] sm:$0xf] %v308
        %312 = vrot.lane.b32.xlu0 %v297, 16
        %v313 = vpop.permute.xlu0 %312
        %314 = vrot.lane.b32.xlu0 %v299, 16
        %v315 = vpop.permute.xlu0 %314
        %vm316 = vcmp.lt.s32.totalorder %v306, 16
        %v317 = vsel %vm316, %v313, %v315
        %v318 = vsel %vm316, %v315, %v313
        %v321 = vrot.slane %v318, 4
        %v322 = vrot.slane %v317, 4
        %325 = vst [vmem:[#allocation2] sm:$0xf0] %v321
        %326 = vst [vmem:[#allocation2 + $0x8] sm:$0xf0] %v322
        %327 = vrot.lane.b32.xlu0 %v297, 15
        %v328 = vpop.permute.xlu0 %327
        %329 = vrot.lane.b32.xlu0 %v299, 15
        %v330 = vpop.permute.xlu0 %329
        %vm331 = vcmp.lt.s32.totalorder %v306, 15
        %v332 = vsel %vm331, %v328, %v330
        %v333 = vsel %vm331, %v330, %v328
        %334 = vst [vmem:[#allocation2 + $0x10] sm:$0xf] %v333
        %335 = vst [vmem:[#allocation2 + $0x18] sm:$0xf] %v332
        %336 = vrot.lane.b32.xlu0 %v297, 1
        %v337 = vpop.permute.xlu0 %336
        %338 = vrot.lane.b32.xlu0 %v299, 1
        %v339 = vpop.permute.xlu0 %338
        %vm340 = vcmp.lt.s32.totalorder %v306, 1
        %v341 = vsel %vm340, %v337, %v339
        %v342 = vsel %vm340, %v339, %v337
        %v345 = vrot.slane %v342, 4
        %v346 = vrot.slane %v341, 4
        %349 = vst [vmem:[#allocation2 + $0x10] sm:$0xf0] %v345
        %350 = vst [vmem:[#allocation2 + $0x18] sm:$0xf0] %v346
        %351 = vst [vmem:[#allocation2 + $0x20] sm:$0xf] %v297
        %352 = vst [vmem:[#allocation2 + $0x28] sm:$0xf] %v299
        %353 = vrot.lane.b32.xlu0 %v297, 127
        %v354 = vpop.permute.xlu0 %353
        %355 = vrot.lane.b32.xlu0 %v299, 127
        %v356 = vpop.permute.xlu0 %355
        %vm357 = vcmp.lt.s32.totalorder %v306, 127
        %v358 = vsel %vm357, %v354, %v356
        %v359 = vsel %vm357, %v356, %v354
        %v362 = vrot.slane %v358, 4
        %v363 = vrot.slane %v359, 4
        %366 = vst [vmem:[#allocation2 + $0x20] sm:$0xf0] %v362
        %367 = vst [vmem:[#allocation2 + $0x28] sm:$0xf0] %v363
        %368 = vrot.lane.b32.xlu0 %v297, 113
        %v369 = vpop.permute.xlu0 %368
        %370 = vrot.lane.b32.xlu0 %v299, 113
        %v371 = vpop.permute.xlu0 %370
        %vm372 = vcmp.lt.s32.totalorder %v306, 113
        %v373 = vsel %vm372, %v369, %v371
        %v374 = vsel %vm372, %v371, %v369
        %375 = vst [vmem:[#allocation2 + $0x30] sm:$0xf] %v373
        %376 = vst [vmem:[#allocation2 + $0x38] sm:$0xf] %v374
        %377 = vrot.lane.b32.xlu0 %v297, 112
        %v378 = vpop.permute.xlu0 %377
        %379 = vrot.lane.b32.xlu0 %v299, 112
        %v380 = vpop.permute.xlu0 %379
        %vm381 = vcmp.lt.s32.totalorder %v306, 112
        %v382 = vsel %vm381, %v378, %v380
        %v383 = vsel %vm381, %v380, %v378
        %v386 = vrot.slane %v382, 4
        %v387 = vrot.slane %v383, 4
        %390 = vst [vmem:[#allocation2 + $0x30] sm:$0xf0] %v386
        %391 = vst [vmem:[#allocation2 + $0x38] sm:$0xf0] %v387
        %392 = vrot.lane.b32.xlu0 %v297, 111
        %v393 = vpop.permute.xlu0 %392
        %394 = vrot.lane.b32.xlu0 %v299, 111
        %v395 = vpop.permute.xlu0 %394
        %vm396 = vcmp.lt.s32.totalorder %v306, 111
        %v397 = vsel %vm396, %v393, %v395
        %v398 = vsel %vm396, %v395, %v393
        %399 = vst [vmem:[#allocation2 + $0x40] sm:$0xf] %v397
        %400 = vst [vmem:[#allocation2 + $0x48] sm:$0xf] %v398
        %v401 = vld [vmem:[#allocation2] sm:$0xff]
        %v402 = vld [vmem:[#allocation2 + $0x8] sm:$0xff]
        %v403 = vld [vmem:[#allocation2 + $0x10] sm:$0xff]
        %v404 = vld [vmem:[#allocation2 + $0x18] sm:$0xff]
        %v405 = vld [vmem:[#allocation2 + $0x20] sm:$0xff]
        %v406 = vld [vmem:[#allocation2 + $0x28] sm:$0xff]
        %v407 = vld [vmem:[#allocation2 + $0x30] sm:$0xff]
        %v408 = vld [vmem:[#allocation2 + $0x38] sm:$0xff]
        %v409 = vld [vmem:[#allocation2 + $0x40] sm:$0xf]
        %v410 = vld [vmem:[#allocation2 + $0x48] sm:$0xf]
        %v411 = vmul.f32 %v401, %v287
        %v412 = vmul.f32 %v402, %v288
        %v413 = vmul.f32 %v403, %v289
        %v414 = vmul.f32 %v404, %v290
        %v415 = vmul.f32 %v405, %v291
        %v416 = vmul.f32 %v406, %v292
        %v417 = vmul.f32 %v407, %v293
        %v418 = vmul.f32 %v408, %v294
        %v419 = vmul.f32 %v409, %v295
        %v420 = vmul.f32 %v410, %v296
        %422 = vset.pattern.permute.xlu0 0
        %423 = vperm.xlu0 %422, %v285
        %v424 = vpop.permute.xlu0 %423
        %vm426 = vcmask 293888
        %v428 = vsel %vm426, %v283, 0
        %vm430 = vcmask 1043456
        %v432 = vsel %vm430, %v419, 0
        %v435 = vsel %vm430, %v420, 0
        %437 = vmatprep.subr.mxu0 0.0
        %438 = vmatpush1.msra.mxu0 0.0
        %439 = vmatprep.subr.mxu0 0.0
        %440 = vmatpush1.msra.mxu0 0.0
        %441 = vmatprep.subr.mxu0 0.0
        %442 = vmatpush1.msra.mxu0 0.0
        %443 = vmatprep.subr.mxu0 0.0
        %444 = vmatpush1.msra.mxu0 0.0
        %445 = vmatprep.subr.mxu0 0.0
        %446 = vmatpush1.msra.mxu0 0.0
        %447 = vmatprep.subr.mxu0 0.0
        %448 = vmatpush1.msra.mxu0 0.0
        %449 = vmatprep.subr.mxu0 0.0
        %450 = vmatpush1.msra.mxu0 0.0
        %451 = vmatprep.subr.mxu0 0.0
        %452 = vmatpush1.msra.mxu0 0.0
        %453 = vmatprep.subr.mxu0 0.0
        %454 = vmatpush1.msra.mxu0 0.0
        %455 = vmatprep.subr.mxu0 0.0
        %456 = vmatpush1.msra.mxu0 0.0
        %457 = vmatprep.subr.mxu0 0.0
        %458 = vmatpush1.msra.mxu0 0.0
        %459 = vmatprep.subr.mxu0 %v435
        %460 = vmatpush1.msra.mxu0 %v432
        %461 = vmatprep.subr.mxu0 %v418
        %462 = vmatpush1.msra.mxu0 %v417
        %463 = vmatprep.subr.mxu0 %v416
        %464 = vmatpush1.msra.mxu0 %v415
        %465 = vmatprep.subr.mxu0 %v414
        %466 = vmatpush1.msra.mxu0 %v413
        %467 = vmatprep.subr.mxu0 %v412
        %468 = vmatpush1.msra.mxu0 %v411
        %469 = vmatprep.subr.mxu0 0.0
        %470 = vmatpush2.msra.mxu0 0.0
        %471 = vmatprep.subr.mxu0 0.0
        %472 = vmatpush2.msra.mxu0 0.0
        %473 = vmatprep.subr.mxu0 0.0
        %474 = vmatpush2.msra.mxu0 0.0
        %475 = vmatprep.subr.mxu0 0.0
        %476 = vmatpush2.msra.mxu0 0.0
        %477 = vmatprep.subr.mxu0 0.0
        %478 = vmatpush2.msra.mxu0 0.0
        %479 = vmatprep.subr.mxu0 0.0
        %480 = vmatpush2.msra.mxu0 0.0
        %481 = vmatprep.subr.mxu0 0.0
        %482 = vmatpush2.msra.mxu0 0.0
        %483 = vmatprep.subr.mxu0 0.0
        %484 = vmatpush2.msra.mxu0 0.0
        %485 = vmatprep.subr.mxu0 0.0
        %486 = vmatpush2.msra.mxu0 0.0
        %487 = vmatprep.subr.mxu0 0.0
        %488 = vmatpush2.msra.mxu0 0.0
        %489 = vmatprep.subr.mxu0 0.0
        %490 = vmatpush2.msra.mxu0 0.0
        %491 = vmatprep.subr.mxu0 0.0
        %492 = vmatpush2.msra.mxu0 0.0
        %493 = vmatprep.subr.mxu0 0.0
        %494 = vmatpush2.msra.mxu0 0.0
        %495 = vmatprep.subr.mxu0 0.0
        %496 = vmatpush2.msra.mxu0 0.0
        %497 = vmatprep.subr.mxu0 0.0
        %498 = vmatpush2.msra.mxu0 0.0
        %499 = vmatprep.subr.mxu0 0.0
        %500 = vmatpush2.msra.mxu0 0.0
        %501 = vmatprep.mubr.f32.mxu0 0.0
        %502 = vmatmul.mubr.f32.gmra.mxu0 %v428
        %v503 = vpop.f32.mrf.mxu0
        %v504 = vadd.f32 %v424, %v503
        %v505 = vpop.f32.mrf.mxu0
        %v506 = vadd.f32 %v424, %v505
        %507 = vdwg.mxu0
        %v508 = vmul.f32 %v504, 0.01
        %v509 = vmul.f32 %v506, 0.01
        %v510 = vmax.f32 %v504, %v508
        %v511 = vmax.f32 %v506, %v509
        %512 = vrot.lane.b32.xlu0 %v510, 17
        %v513 = vpop.permute.xlu0 %512
        %514 = vrot.lane.b32.xlu0 %v511, 17
        %v515 = vpop.permute.xlu0 %514
        %v516 = vsel %vm307, %v513, %v515
        %v517 = vsel %vm307, %v515, %v513
        %518 = vst [vmem:[#allocation2] sm:$0xf] %v517
        %519 = vst [vmem:[#allocation2 + $0x8] sm:$0xf] %v516
        %520 = vrot.lane.b32.xlu0 %v510, 16
        %v521 = vpop.permute.xlu0 %520
        %522 = vrot.lane.b32.xlu0 %v511, 16
        %v523 = vpop.permute.xlu0 %522
        %v524 = vsel %vm316, %v521, %v523
        %v525 = vsel %vm316, %v523, %v521
        %v528 = vrot.slane %v525, 4
        %v529 = vrot.slane %v524, 4
        %532 = vst [vmem:[#allocation2] sm:$0xf0] %v528
        %533 = vst [vmem:[#allocation2 + $0x8] sm:$0xf0] %v529
        %534 = vrot.lane.b32.xlu0 %v510, 15
        %v535 = vpop.permute.xlu0 %534
        %536 = vrot.lane.b32.xlu0 %v511, 15
        %v537 = vpop.permute.xlu0 %536
        %v538 = vsel %vm331, %v535, %v537
        %v539 = vsel %vm331, %v537, %v535
        %540 = vst [vmem:[#allocation2 + $0x10] sm:$0xf] %v539
        %541 = vst [vmem:[#allocation2 + $0x18] sm:$0xf] %v538
        %542 = vrot.lane.b32.xlu0 %v510, 1
        %v543 = vpop.permute.xlu0 %542
        %544 = vrot.lane.b32.xlu0 %v511, 1
        %v545 = vpop.permute.xlu0 %544
        %v546 = vsel %vm340, %v543, %v545
        %v547 = vsel %vm340, %v545, %v543
        %v550 = vrot.slane %v547, 4
        %v551 = vrot.slane %v546, 4
        %554 = vst [vmem:[#allocation2 + $0x10] sm:$0xf0] %v550
        %555 = vst [vmem:[#allocation2 + $0x18] sm:$0xf0] %v551
        %556 = vst [vmem:[#allocation2 + $0x20] sm:$0xf] %v510
        %557 = vst [vmem:[#allocation2 + $0x28] sm:$0xf] %v511
        %558 = vrot.lane.b32.xlu0 %v510, 127
        %v559 = vpop.permute.xlu0 %558
        %560 = vrot.lane.b32.xlu0 %v511, 127
        %v561 = vpop.permute.xlu0 %560
        %v562 = vsel %vm357, %v559, %v561
        %v563 = vsel %vm357, %v561, %v559
        %v566 = vrot.slane %v562, 4
        %v567 = vrot.slane %v563, 4
        %570 = vst [vmem:[#allocation2 + $0x20] sm:$0xf0] %v566
        %571 = vst [vmem:[#allocation2 + $0x28] sm:$0xf0] %v567
        %572 = vrot.lane.b32.xlu0 %v510, 113
        %v573 = vpop.permute.xlu0 %572
        %574 = vrot.lane.b32.xlu0 %v511, 113
        %v575 = vpop.permute.xlu0 %574
        %v576 = vsel %vm372, %v573, %v575
        %v577 = vsel %vm372, %v575, %v573
        %578 = vst [vmem:[#allocation2 + $0x30] sm:$0xf] %v576
        %579 = vst [vmem:[#allocation2 + $0x38] sm:$0xf] %v577
        %580 = vrot.lane.b32.xlu0 %v510, 112
        %v581 = vpop.permute.xlu0 %580
        %582 = vrot.lane.b32.xlu0 %v511, 112
        %v583 = vpop.permute.xlu0 %582
        %v584 = vsel %vm381, %v581, %v583
        %v585 = vsel %vm381, %v583, %v581
        %v588 = vrot.slane %v584, 4
        %v589 = vrot.slane %v585, 4
        %592 = vst [vmem:[#allocation2 + $0x30] sm:$0xf0] %v588
        %593 = vst [vmem:[#allocation2 + $0x38] sm:$0xf0] %v589
        %594 = vrot.lane.b32.xlu0 %v510, 111
        %v595 = vpop.permute.xlu0 %594
        %596 = vrot.lane.b32.xlu0 %v511, 111
        %v597 = vpop.permute.xlu0 %596
        %v598 = vsel %vm396, %v595, %v597
        %v599 = vsel %vm396, %v597, %v595
        %600 = vst [vmem:[#allocation2 + $0x40] sm:$0xf] %v598
        %601 = vst [vmem:[#allocation2 + $0x48] sm:$0xf] %v599
        %v602 = vld [vmem:[#allocation2] sm:$0xff]
        %v603 = vld [vmem:[#allocation2 + $0x8] sm:$0xff]
        %v604 = vld [vmem:[#allocation2 + $0x10] sm:$0xff]
        %v605 = vld [vmem:[#allocation2 + $0x18] sm:$0xff]
        %v606 = vld [vmem:[#allocation2 + $0x20] sm:$0xff]
        %v607 = vld [vmem:[#allocation2 + $0x28] sm:$0xff]
        %v608 = vld [vmem:[#allocation2 + $0x30] sm:$0xff]
        %v609 = vld [vmem:[#allocation2 + $0x38] sm:$0xff]
        %v610 = vld [vmem:[#allocation2 + $0x40] sm:$0xf]
        %v611 = vld [vmem:[#allocation2 + $0x48] sm:$0xf]
        %v612 = vmul.f32 %v602, %v287
        %v613 = vmul.f32 %v603, %v288
        %v614 = vmul.f32 %v604, %v289
        %v615 = vmul.f32 %v605, %v290
        %v616 = vmul.f32 %v606, %v291
        %v617 = vmul.f32 %v607, %v292
        %v618 = vmul.f32 %v608, %v293
        %v619 = vmul.f32 %v609, %v294
        %v620 = vmul.f32 %v610, %v295
        %v621 = vmul.f32 %v611, %v296
        %623 = vset.pattern.permute.xlu0 0
        %624 = vperm.xlu0 %623, %v286
        %v625 = vpop.permute.xlu0 %624
        %v628 = vsel %vm426, %v284, 0
        %v631 = vsel %vm430, %v620, 0
        %v634 = vsel %vm430, %v621, 0
        %636 = vmatprep.subr.mxu0 0.0
        %637 = vmatpush1.msra.mxu0 0.0
        %638 = vmatprep.subr.mxu0 0.0
        %639 = vmatpush1.msra.mxu0 0.0
        %640 = vmatprep.subr.mxu0 0.0
        %641 = vmatpush1.msra.mxu0 0.0
        %642 = vmatprep.subr.mxu0 0.0
        %643 = vmatpush1.msra.mxu0 0.0
        %644 = vmatprep.subr.mxu0 0.0
        %645 = vmatpush1.msra.mxu0 0.0
        %646 = vmatprep.subr.mxu0 0.0
        %647 = vmatpush1.msra.mxu0 0.0
        %648 = vmatprep.subr.mxu0 0.0
        %649 = vmatpush1.msra.mxu0 0.0
        %650 = vmatprep.subr.mxu0 0.0
        %651 = vmatpush1.msra.mxu0 0.0
        %652 = vmatprep.subr.mxu0 0.0
        %653 = vmatpush1.msra.mxu0 0.0
        %654 = vmatprep.subr.mxu0 0.0
        %655 = vmatpush1.msra.mxu0 0.0
        %656 = vmatprep.subr.mxu0 0.0
        %657 = vmatpush1.msra.mxu0 0.0
        %658 = vmatprep.subr.mxu0 %v634
        %659 = vmatpush1.msra.mxu0 %v631
        %660 = vmatprep.subr.mxu0 %v619
        %661 = vmatpush1.msra.mxu0 %v618
        %662 = vmatprep.subr.mxu0 %v617
        %663 = vmatpush1.msra.mxu0 %v616
        %664 = vmatprep.subr.mxu0 %v615
        %665 = vmatpush1.msra.mxu0 %v614
        %666 = vmatprep.subr.mxu0 %v613
        %667 = vmatpush1.msra.mxu0 %v612
        %668 = vmatprep.subr.mxu0 0.0
        %669 = vmatpush2.msra.mxu0 0.0
        %670 = vmatprep.subr.mxu0 0.0
        %671 = vmatpush2.msra.mxu0 0.0
        %672 = vmatprep.subr.mxu0 0.0
        %673 = vmatpush2.msra.mxu0 0.0
        %674 = vmatprep.subr.mxu0 0.0
        %675 = vmatpush2.msra.mxu0 0.0
        %676 = vmatprep.subr.mxu0 0.0
        %677 = vmatpush2.msra.mxu0 0.0
        %678 = vmatprep.subr.mxu0 0.0
        %679 = vmatpush2.msra.mxu0 0.0
        %680 = vmatprep.subr.mxu0 0.0
        %681 = vmatpush2.msra.mxu0 0.0
        %682 = vmatprep.subr.mxu0 0.0
        %683 = vmatpush2.msra.mxu0 0.0
        %684 = vmatprep.subr.mxu0 0.0
        %685 = vmatpush2.msra.mxu0 0.0
        %686 = vmatprep.subr.mxu0 0.0
        %687 = vmatpush2.msra.mxu0 0.0
        %688 = vmatprep.subr.mxu0 0.0
        %689 = vmatpush2.msra.mxu0 0.0
        %690 = vmatprep.subr.mxu0 0.0
        %691 = vmatpush2.msra.mxu0 0.0
        %692 = vmatprep.subr.mxu0 0.0
        %693 = vmatpush2.msra.mxu0 0.0
        %694 = vmatprep.subr.mxu0 0.0
        %695 = vmatpush2.msra.mxu0 0.0
        %696 = vmatprep.subr.mxu0 0.0
        %697 = vmatpush2.msra.mxu0 0.0
        %698 = vmatprep.subr.mxu0 0.0
        %699 = vmatpush2.msra.mxu0 0.0
        %700 = vmatprep.mubr.f32.mxu0 0.0
        %701 = vmatmul.mubr.f32.gmra.mxu0 %v628
        %v702 = vpop.f32.mrf.mxu0
        %v703 = vadd.f32 %v625, %v702
        %v704 = vpop.f32.mrf.mxu0
        %v705 = vadd.f32 %v625, %v704
        %706 = vdwg.mxu0
        %v709 = vcombine.low %v703, %v705
        %v711 = vadd.f32 %v297, %v709
        %712 = vst [vmem:[%s282] sm:$0xff] %v711
        %s713 = sand.u32 %s163, 1
        %s714 = scalar_lea.sflag [#allocation5], %s713
        %s715 = sand.u32 %s163, 1
        %s716 = smul.addr %s715, 8
        %s717 = scalar_lea.vmem [#allocation8], %s716
        // Predicated region
        $region53: #{tpu_custom_call.1} parent=43 // pred_check
          %p718 = pneg %p173
        $region54: #{tpu_custom_call.1} parent=43 // pred_check_branch
          %720 = sbr.rel (%p718) target = $region56
        $region55: #{tpu_custom_call.1} parent=43 // pred_region
          %s722 = ssub.s32 128, 128
          %723 = vsyncadd %s714, %s722
          %s724 = smul.addr %s24, 2
          %s725 = smul.addr %s724, 64
          %s726 = scalar_lea.hbm %s6, %s725
          %s728 = sshll.u32 %s717, 4
          %s729 = int_to_ptr.vmem [resolvable:$true] %s728
          %731 = dma.vmem_to_hbm [thread:$0]  %s729, 128, %s726, %s714
        $region56: #{tpu_custom_call.1} parent=43 // pred_fallthru
          _
      $region44: #{tpu_custom_call.1} parent=5 // pred_fallthru
        _
      %p732 = scmp.le.s32.totalorder 2, %s19
      // Predicated region
      $region57: #{tpu_custom_call.1} parent=5 // pred_check
        %p733 = pneg %p732
      $region58: #{tpu_custom_call.1} parent=5 // pred_check_branch
        %735 = sbr.rel (%p733) target = $region60
      $region59: #{tpu_custom_call.1} parent=5 // pred_region
        %s736 = ssub.s32 %s19, 2
        // Predicated region
        $region61: #{tpu_custom_call.1} parent=59 // pred_check
          %p737 = pneg %p179
        $region62: #{tpu_custom_call.1} parent=59 // pred_check_branch
          %739 = sbr.rel (%p737) target = $region64
        $region63: #{tpu_custom_call.1} parent=59 // pred_region
          %s740 = sand.u32 %s164, 1
          %s741 = scalar_lea.sflag [#allocation5], %s740
          %s742 = sand.u32 %s164, 1
          %s743 = smul.addr %s742, 8
          %s744 = scalar_lea.vmem [#allocation8], %s743
          %745 = dma.done %s741, 128
        $region64: #{tpu_custom_call.1} parent=59 // pred_fallthru
          _
      $region60: #{tpu_custom_call.1} parent=5 // pred_fallthru
        _
    $region6: #{tpu_custom_call.1} parent=1 // loop_footer
      %s23 = sadd.s32 1, %s19
    $region7: #{tpu_custom_call.1} parent=1 // loop_footer_branch
      %18 = sbr.rel target = $region3
    $region8: #{tpu_custom_call.1} parent=1 // loop_exit
      _
    %746 = vsyncpa [#allocation4], 1
    %s747 = scalar_lea.sflag [#allocation4], 1
    %748 = vsyncpa %s747, 1
    %749 = vsyncpa [#allocation7], 1
    %750 = vsyncpa [#allocation5], 1
    %s751 = scalar_lea.sflag [#allocation5], 1
    %752 = vsyncpa %s751, 1

</llo_original>
